<compile_context>
chip_gen: v7x
topology: tpu7x:2x2x1
jax: 0.10.0
libtpu: 0.0.40
codegen_flags: <defaults>
</compile_context>

<pallas_src>
import functools

import jax
import jax.numpy as jnp
from jax.experimental import pallas as pl
from jax.experimental.pallas import tpu as pltpu

_LANE = 128


def _copy_kernel(x_ref, o_ref):
    o_ref[...] = x_ref[...]


def _resolve_shape(total, shape):
    """torch.view shape resolution, including a single -1 entry."""
    shape = [int(s) for s in shape]
    if shape.count(-1) > 1:
        raise ValueError("only one dimension can be inferred (-1)")
    if -1 in shape:
        known = 1
        for s in shape:
            if s != -1:
                known *= s
        if known == 0 or total % known != 0:
            raise ValueError(f"cannot view {total} elements as {shape}")
        shape[shape.index(-1)] = total // known
    else:
        prod = 1
        for s in shape:
            prod *= s
        if prod != total:
            raise ValueError(f"cannot view {total} elements as {shape}")
    return tuple(shape)


def _native_sublane(dtype):
    """Native packed sublane tile: 8 for f32, 16 for bf16, 32 for int8/fp8."""
    itemsize = jnp.dtype(dtype).itemsize
    return 8 * max(1, 4 // itemsize)


def _hw_budget():
    """(target block bytes, scoped-VMEM cap) for the local TPU generation."""
    try:
        vmem_bytes = int(getattr(pltpu.get_tpu_info(), "vmem_capacity_bytes"))
    except Exception:
        vmem_bytes = 64 << 20          # conservative default (v7x-sized VMEM)
    if vmem_bytes >= (96 << 20):       # v5e / v6e: 128 MiB physical VMEM
        return 8 << 20, 64 << 20
    return 6 << 20, 48 << 20           # v7x: 64 MiB physical VMEM


def _pick_block_rows(rows, itemsize, sublane, target_bytes):
    if rows <= sublane:
        return int(rows)               # full-extent block (always legal)
    by_bytes = max(sublane,
                   (target_bytes // (_LANE * itemsize)) // sublane * sublane)
    if by_bytes >= rows:
        return int(rows)               # single full-extent block, no clamp
    block = by_bytes
    # Best effort: keep the number of grid steps even so the 1-D "parallel"
    # grid splits evenly across v7x's two TensorCores (harmless on 1-TC chips).
    steps = pl.cdiv(rows, block)
    if steps > 1 and steps % 2 == 1:
        cand = pl.cdiv(pl.cdiv(rows, steps + 1), sublane) * sublane
        if cand >= sublane and pl.cdiv(rows, cand) % 2 == 0:
            block = cand
    return int(block)


def _copy_2d(slab, target_bytes, vmem_cap):
    """Bandwidth-bound identity copy of a lane-dense [rows, 128] slab."""
    rows, lanes = slab.shape
    itemsize = jnp.dtype(slab.dtype).itemsize
    sublane = _native_sublane(slab.dtype)
    block_rows = _pick_block_rows(rows, itemsize, sublane, target_bytes)
    grid = (pl.cdiv(rows, block_rows),)
    block_bytes = block_rows * lanes * itemsize
    # in+out double-buffered plus headroom; capped per-generation.
    vmem_limit = int(min(max(6 * block_bytes, 32 << 20), vmem_cap))
    return pl.pallas_call(
        _copy_kernel,
        out_shape=jax.ShapeDtypeStruct((rows, lanes), slab.dtype),
        grid_spec=pltpu.PrefetchScalarGridSpec(
            num_scalar_prefetch=0,
            grid=grid,
            in_specs=[pl.BlockSpec((block_rows, lanes), lambda i: (i, 0))],
            out_specs=pl.BlockSpec((block_rows, lanes), lambda i: (i, 0)),
        ),
        compiler_params=pltpu.CompilerParams(
            dimension_semantics=("parallel",),
            vmem_limit_bytes=vmem_limit,
        ),
        cost_estimate=pl.CostEstimate(
            flops=0,
            transcendentals=0,
            bytes_accessed=2 * rows * lanes * itemsize,
        ),
    )(slab)


@functools.partial(jax.jit, static_argnums=(1,))
def _view_copy(x, out_shape):
    total = x.size
    flat = jnp.reshape(x, (-1,))
    target_bytes, vmem_cap = _hw_budget()

    rows_main = total // _LANE
    rem = total - rows_main * _LANE

    if rem == 0:
        # Aligned fast path: pad-free and slice-free.
        slab = jnp.reshape(flat, (rows_main, _LANE))
        flat_out = jnp.reshape(_copy_2d(slab, target_bytes, vmem_cap), (-1,))
    elif rows_main == 0:
        # Tiny input (< 128 elements): one padded (1, 128) tile.
        tile = jnp.reshape(jnp.pad(flat, (0, _LANE - rem)), (1, _LANE))
        flat_out = jnp.reshape(_copy_2d(tile, target_bytes, vmem_cap), (-1,))[:total]
    else:
        # Ragged tail: run the kernel only on the aligned prefix and join the
        # <128-element remainder with a single concatenate (no full-array
        # pad + slice round trip).
        elems_main = rows_main * _LANE
        prefix = jnp.reshape(jax.lax.slice(flat, (0,), (elems_main,)),
                             (rows_main, _LANE))
        main_out = jnp.reshape(_copy_2d(prefix, target_bytes, vmem_cap), (-1,))
        tail = jax.lax.slice(flat, (elems_main,), (total,))
        flat_out = jnp.concatenate([main_out, tail])
    return jnp.reshape(flat_out, out_shape)


def view_pallas(x, shape, *, alias=False):
    """Reproduce x.view(*shape) on a contiguous (row-major) tensor.

    alias=True returns the metadata-only jnp.reshape (true torch.view
    zero-copy semantics). alias=False (default) materializes a fresh buffer
    through the Pallas copy kernel. Note: torch.view errors on non-contiguous
    inputs; this behaves like reshape, which matches the forward semantics
    for contiguous tensors.
    """
    out_shape = _resolve_shape(int(x.size), tuple(shape))
    if alias or x.size == 0:
        return jnp.reshape(x, out_shape)
    return _view_copy(x, out_shape)


class View:
    """Pallas counterpart of the PyTorch `View` module."""

    def __init__(self, shape):
        self.shape = tuple(shape)

    def __call__(self, x):
        return view_pallas(x, self.shape)


if __name__ == "__main__":
    key = jax.random.PRNGKey(0)
    # PyTorch conv-style NCHW input
    x = jax.random.normal(key, (2, 4, 16, 16), dtype=jnp.float32)

    # View(shape=(2, -1)) : flatten everything but batch
    view = View((2, -1))
    y = jax.block_until_ready(view(x))
    ref = jnp.reshape(x, (2, -1))
    assert y.shape == ref.shape and y.dtype == x.dtype
    assert bool(jnp.all(y == ref))

    # second view shape
    y2 = jax.block_until_ready(view_pallas(x, (8, 16, 16)))
    assert y2.shape == (8, 16, 16)
    assert bool(jnp.all(y2 == jnp.reshape(x, (8, 16, 16))))

    # bf16 path (native sublane tile = 16), aligned, pad-free fast path
    xb = jax.random.normal(jax.random.PRNGKey(1), (4, 64, 128), dtype=jnp.bfloat16)
    y3 = jax.block_until_ready(view_pallas(xb, (-1, 256)))
    assert y3.shape == (128, 256)
    assert bool(jnp.all(y3 == jnp.reshape(xb, (-1, 256))))

    # tiny ragged input (< 128 elements): padded single-tile path
    xr = jax.random.normal(jax.random.PRNGKey(2), (3, 5, 7), dtype=jnp.float32)
    y4 = jax.block_until_ready(view_pallas(xr, (-1,)))
    assert y4.shape == (105,)
    assert bool(jnp.all(y4 == jnp.reshape(xr, (-1,))))

    # ragged tail with >= 128 elements: aligned-prefix kernel + tail concat
    xg = jax.random.normal(jax.random.PRNGKey(3), (3, 7, 13), dtype=jnp.float32)
    y5 = jax.block_until_ready(view_pallas(xg, (21, 13)))
    assert y5.shape == (21, 13)
    assert bool(jnp.all(y5 == jnp.reshape(xg, (21, 13))))

    # zero-element tensor (previously crashed with a grid division by zero)
    xz = jnp.zeros((2, 0, 4), dtype=jnp.float32)
    y6 = jax.block_until_ready(view_pallas(xz, (0, 8)))
    assert y6.shape == (0, 8)

    # zero-copy alias fast path (true torch.view semantics)
    y7 = jax.block_until_ready(view_pallas(x, (2, -1), alias=True))
    assert bool(jnp.all(y7 == ref))

    print("KERNEL_OK")
</pallas_src>

<mosaic_0001>
module attributes {stable_mosaic.version = 11 : i64} {
  func.func @_copy_kernel(%arg0: i32, %arg1: memref<16x128xf32, #tpu.memory_space<vmem>>, %arg2: memref<16x128xf32, #tpu.memory_space<vmem>>) attributes {dimension_semantics = [#tpu.dimension_semantics<parallel>], iteration_bounds = array<i64: 1>, scalar_prefetch = 0 : i64, scratch_operands = 0 : i64, tpu.core_type = #tpu.core_type<tc>, window_params = [{transform_indices = @transform_0, window_bounds = array<i64: 16, 128>}, {transform_indices = @transform_1, window_bounds = array<i64: 16, 128>}]} {
    %c0 = arith.constant 0 : index
    %c0_0 = arith.constant 0 : index
    %0 = vector.load %arg1[%c0, %c0_0] : memref<16x128xf32, #tpu.memory_space<vmem>>, vector<16x128xf32>
    %c0_1 = arith.constant 0 : index
    %c0_2 = arith.constant 0 : index
    %1 = vector.load %arg2[%c0_1, %c0_2] : memref<16x128xf32, #tpu.memory_space<vmem>>, vector<16x128xf32>
    tpu.vector_store %arg2[%c0_1, %c0_2], %0 {strides = array<i32>} : memref<16x128xf32, #tpu.memory_space<vmem>>, vector<16x128xf32>,
    return
  }
  func.func @transform_0(%arg0: i32) -> (i32, i32) {
    %c0_i32 = arith.constant 0 : i32
    %c0_i32_0 = arith.constant 0 : i32
    return %arg0, %c0_i32 : i32, i32
  }
  func.func @transform_1(%arg0: i32) -> (i32, i32) {
    %c0_i32 = arith.constant 0 : i32
    %c0_i32_0 = arith.constant 0 : i32
    return %arg0, %c0_i32 : i32, i32
  }
}

</mosaic_0001>

<llo_original>
// kernel: _view_copy.1
$region0: #{_view_copy.1}
  #allocation0 [shape = 'u32[]', space=smem, size = 0x4, offset = 0x4, fixed_abs, tag = 'smem constant byte address 0x4 - core index']
  #allocation1 [shape = 'u32[144,128]{1,0:T(1,128)}', space=vmem, size = 0x12000, scoped, tag = 'internal scratch']
  %s0 = inlined_call_operand.vmem [shape: f32[16,128], index: 0, kind: input, shape index: {}]
  %s1 = inlined_call_operand.vmem [shape: f32[16,128], index: 1, kind: output, shape index: {}]
  %s2 = sld [smem:[#allocation0]]
  $region14: #{_view_copy.1} parent=0
    _
  %s4 = ssub.s32 1, %s2
  %s5 = scalar_select 0, %s4, %s2
  // Predicated region
  $region2: #{_view_copy.1} parent=0 // pred_check
    _
  $region3: #{_view_copy.1} parent=0 // pred_check_branch
    %7 = sbr.rel (0) target = $region5
  $region4: #{_view_copy.1} parent=0 // pred_region
    _
  $region5: #{_view_copy.1} parent=0 // pred_fallthru
    _
  %v8 = vld [vmem:[%s0] sm:$0xff]
  %v9 = vld [vmem:[%s0 + $0x8] sm:$0xff]
  %10 = vst [vmem:[%s1] sm:$0xff] %v8
  %11 = vst [vmem:[%s1 + $0x8] sm:$0xff] %v9
  // Predicated region
  $region6: #{_view_copy.1} parent=0 // pred_check
    _
  $region7: #{_view_copy.1} parent=0 // pred_check_branch
    %13 = sbr.rel (0) target = $region9
  $region8: #{_view_copy.1} parent=0 // pred_region
    _
  $region9: #{_view_copy.1} parent=0 // pred_fallthru
    _
  // Predicated region
  $region10: #{_view_copy.1} parent=0 // pred_check
    _
  $region11: #{_view_copy.1} parent=0 // pred_check_branch
    %15 = sbr.rel (0) target = $region13
  $region12: #{_view_copy.1} parent=0 // pred_region
    _
  $region13: #{_view_copy.1} parent=0 // pred_fallthru
    _

</llo_original>
